<compile_context>
chip_gen: v5e
topology: v5e:2x2
jax: 0.10.0
libtpu: 0.0.40
codegen_flags: <defaults>
</compile_context>

<pallas_src>
import functools

import jax
import jax.numpy as jnp
from jax.experimental import pallas as pl
from jax.experimental.pallas import tpu as pltpu

# ---- config (mirrors config.py of the original repo) -----------------------
KEYPOINT_NUM = 21                       # hand keypoints
OTHER_JOINT_ANGLES_NUM = 23             # config.other_joint_angles_num
INPUT_DIM = KEYPOINT_NUM * 3            # 63
ROOT_ANGLES_NUM = 3
NEG_SLOPE = 0.01                        # PyTorch LeakyReLU default slope

# ---- fused weight-slab layout (rows of a (SLAB_ROWS, 128) f32 array) -------
LANE = 128
PAD_IN = 64          # 63 input features padded to 64 (sublane-aligned K dim)
OUT_LANES = 32       # 3 + 23 = 26 fused outputs, padded to 32 output lanes
W1_OFF = 0           # rows [0, 64)    : fused layer-1 weights (63, 62) zero-padded
W2_OFF = 64          # rows [64, 192)  : block-diag layer-2 weights (62, 30) zero-padded
W3_OFF = 192         # rows [192, 320) : block-diag layer-3 weights (30, 26) zero-padded
BIAS_OFF = 320       # rows [320, 328) : row 0 = b1, row 1 = b2, row 2 = b3 (zero-padded)
SLAB_ROWS = 328


def _round_up(x, m):
    return ((x + m - 1) // m) * m


def _mlp_dims(input_dim, output_dim, num_layers=2):
    dims = [input_dim]
    d = input_dim
    for _ in range(num_layers):
        d = d // 2
        dims.append(d)
    dims.append(output_dim)
    return dims                          # e.g. [63, 31, 15, out]


def _init_mlp_params(key, dims):
    """Deterministic small-uniform init (PyTorch-Linear-like fan_in scaling)."""
    params = []
    for i in range(len(dims) - 1):
        key, kw, kb = jax.random.split(key, 3)
        fan_in = dims[i]
        bound = 1.0 / jnp.sqrt(fan_in)
        w = jax.random.uniform(kw, (dims[i], dims[i + 1]), jnp.float32,
                               minval=-bound, maxval=bound)
        b = jax.random.uniform(kb, (1, dims[i + 1]), jnp.float32,
                               minval=-bound, maxval=bound)
        params += [w, b]
    return params                        # [w1, b1, w2, b2, w3, b3]


def pack_bone_angle_params(params_mlp1, params_mlp2):
    """Pack both MLPs into one lane-padded (SLAB_ROWS, 128) slab (fused + block-diag).

    Call ONCE when parameters are created/updated; pass the slab to every forward call.
    """
    w1a, b1a, w2a, b2a, w3a, b3a = params_mlp1
    w1b, b1b, w2b, b2b, w3b, b3b = params_mlp2

    in_dim = w1a.shape[0]                               # 63
    d1a, d1b = w1a.shape[1], w1b.shape[1]               # 31, 31
    d2a, d2b = w2a.shape[1], w2b.shape[1]               # 15, 15
    d3a, d3b = w3a.shape[1], w3b.shape[1]               # 3, 23

    # The slab constants hard-code the 63->31->15->{3,23} structure; fail loudly otherwise.
    assert w1b.shape[0] == in_dim and in_dim <= PAD_IN
    assert w2a.shape[0] == d1a and w2b.shape[0] == d1b
    assert w3a.shape[0] == d2a and w3b.shape[0] == d2b
    assert d1a + d1b <= min(LANE, W3_OFF - W2_OFF)
    assert d2a + d2b <= min(LANE, BIAS_OFF - W3_OFF)
    assert d3a + d3b <= OUT_LANES

    slab = jnp.zeros((SLAB_ROWS, LANE), jnp.float32)
    # layer 1: concat along output axis -> (in_dim, d1a+d1b)
    slab = slab.at[W1_OFF:W1_OFF + in_dim, 0:d1a].set(w1a)
    slab = slab.at[W1_OFF:W1_OFF + in_dim, d1a:d1a + d1b].set(w1b)
    # layer 2: block diagonal -> (d1a+d1b, d2a+d2b)
    slab = slab.at[W2_OFF:W2_OFF + d1a, 0:d2a].set(w2a)
    slab = slab.at[W2_OFF + d1a:W2_OFF + d1a + d1b, d2a:d2a + d2b].set(w2b)
    # layer 3: block diagonal -> (d2a+d2b, d3a+d3b)
    slab = slab.at[W3_OFF:W3_OFF + d2a, 0:d3a].set(w3a)
    slab = slab.at[W3_OFF + d2a:W3_OFF + d2a + d2b, d3a:d3a + d3b].set(w3b)
    # biases (one row each inside a single (8,128) block)
    slab = slab.at[BIAS_OFF + 0, 0:d1a].set(b1a[0])
    slab = slab.at[BIAS_OFF + 0, d1a:d1a + d1b].set(b1b[0])
    slab = slab.at[BIAS_OFF + 1, 0:d2a].set(b2a[0])
    slab = slab.at[BIAS_OFF + 1, d2a:d2a + d2b].set(b2b[0])
    slab = slab.at[BIAS_OFF + 2, 0:d3a].set(b3a[0])
    slab = slab.at[BIAS_OFF + 2, d3a:d3a + d3b].set(b3b[0])
    return slab


# ---- Pallas kernel: fused 3-matmul chain, fully VMEM-resident --------------
def _make_kernel(compute_dtype):
    def fused_bone_angle_kernel(x_ref, slab_ref, o_ref):
        x = x_ref[...]                                       # (TB, 64) f32

        # static, tile-aligned slices of the packed weight slab
        w1 = slab_ref[W1_OFF:W1_OFF + PAD_IN, :]             # (64, 128)
        w2 = slab_ref[W2_OFF:W2_OFF + LANE, :]               # (128, 128)
        w3 = slab_ref[W3_OFF:W3_OFF + LANE, :]               # (128, 128)
        biases = slab_ref[BIAS_OFF:BIAS_OFF + 8, :]          # (8, 128)
        b1 = biases[0:1, :]
        b2 = biases[1:2, :]
        b3 = biases[2:3, :]

        def leaky(v):
            # valid for 0 <= slope <= 1: max(v, s*v) == LeakyReLU(v); 2 VALU ops not 3
            return jnp.maximum(v, NEG_SLOPE * v)

        def mm(a, w):
            return jnp.dot(a.astype(compute_dtype), w.astype(compute_dtype),
                           preferred_element_type=jnp.float32)

        h = leaky(mm(x, w1) + b1)                            # (TB, 128), lanes 62+ stay 0
        h = leaky(mm(h, w2) + b2)                            # (TB, 128), lanes 30+ stay 0
        y = mm(h, w3) + b3                                   # (TB, 128), lanes 26+ stay 0
        # narrow store: only the first 32 lanes are written back (26 useful) -> 4x less HBM
        o_ref[...] = y[:, :OUT_LANES].astype(o_ref.dtype)

    return fused_bone_angle_kernel


@functools.partial(jax.jit, static_argnames=("block_b", "compute_dtype"))
def bone_angle_prediction(x, slab, *, block_b=8192, compute_dtype=jnp.float32):
    """Forward pass of BoneAnglePrediction. Returns (root_angles, other_angles).

    x:    (B, 63) features.
    slab: packed weights from pack_bone_angle_params (built once, not per call).
    """
    B, F = x.shape
    assert F == INPUT_DIM and F <= PAD_IN

    # batch tiling:
    #  - at least 2 grid steps when B > 8 so both v7x TensorCores are used
    #  - tiles balanced and capped at block_b (VMEM at 8192 rows is ~6 MiB total)
    n_steps = max(1, pl.cdiv(B, block_b))
    if B > 8:
        n_steps = max(n_steps, 2)
    tb = max(8, min(block_b, _round_up(pl.cdiv(B, n_steps), 8)))
    b_pad = _round_up(B, tb)             # at most ~8*n_steps rows of padding (tiny)
    grid = (b_pad // tb,)

    # single cheap pad: 63 -> 64 features (required) + a handful of batch rows
    x_pad = jnp.pad(x.astype(jnp.float32), ((0, b_pad - B), (0, PAD_IN - F)))

    flops = 2 * b_pad * (PAD_IN * LANE + LANE * LANE + LANE * LANE)
    bytes_accessed = (b_pad * PAD_IN * 4) + (b_pad * OUT_LANES * 4) + (SLAB_ROWS * LANE * 4)

    out = pl.pallas_call(
        _make_kernel(compute_dtype),
        out_shape=jax.ShapeDtypeStruct((b_pad, OUT_LANES), jnp.float32),
        grid_spec=pltpu.PrefetchScalarGridSpec(
            num_scalar_prefetch=0,
            grid=grid,
            in_specs=[
                pl.BlockSpec((tb, PAD_IN), lambda i: (i, 0)),       # x tile, pipelined
                pl.BlockSpec((SLAB_ROWS, LANE), lambda i: (0, 0)),  # weights, VMEM-resident
            ],
            out_specs=pl.BlockSpec((tb, OUT_LANES), lambda i: (i, 0)),
        ),
        compiler_params=pltpu.CompilerParams(
            dimension_semantics=("parallel",),
            vmem_limit_bytes=32 * 1024 * 1024,
        ),
        cost_estimate=pl.CostEstimate(flops=flops, transcendentals=0,
                                      bytes_accessed=bytes_accessed),
    )(x_pad, slab)

    root_angles = out[:B, 0:ROOT_ANGLES_NUM]
    other_angles = out[:B, ROOT_ANGLES_NUM:ROOT_ANGLES_NUM + OTHER_JOINT_ANGLES_NUM]
    return root_angles, other_angles


# ---- pure-JAX reference (for correctness check) ----------------------------
def _reference(x, params):
    w1, b1, w2, b2, w3, b3 = params

    def leaky(v):
        return jnp.where(v >= 0, v, NEG_SLOPE * v)

    h = leaky(x @ w1 + b1)
    h = leaky(h @ w2 + b2)
    return h @ w3 + b3


if __name__ == "__main__":
    key = jax.random.PRNGKey(0)
    kx, kx2, k1, k2 = jax.random.split(key, 4)

    dims1 = _mlp_dims(INPUT_DIM, ROOT_ANGLES_NUM, num_layers=2)         # [63, 31, 15, 3]
    dims2 = _mlp_dims(INPUT_DIM, OTHER_JOINT_ANGLES_NUM, num_layers=2)  # [63, 31, 15, 23]
    params_mlp1 = _init_mlp_params(k1, dims1)
    params_mlp2 = _init_mlp_params(k2, dims2)

    # pack weights ONCE (hoisted out of the per-call path)
    slab = pack_bone_angle_params(params_mlp1, params_mlp2)

    # small test (single grid step)
    B = 2
    x = jax.random.normal(kx, (B, INPUT_DIM), jnp.float32)
    root_angles, other_angles = bone_angle_prediction(x, slab)
    jax.block_until_ready((root_angles, other_angles))

    assert root_angles.shape == (B, ROOT_ANGLES_NUM)
    assert other_angles.shape == (B, OTHER_JOINT_ANGLES_NUM)
    assert jnp.allclose(root_angles, _reference(x, params_mlp1), rtol=1e-5, atol=1e-5)
    assert jnp.allclose(other_angles, _reference(x, params_mlp2), rtol=1e-5, atol=1e-5)

    # larger test: exercises the 2-step "parallel" grid + minimal batch padding path
    B2 = 37
    x2 = jax.random.normal(kx2, (B2, INPUT_DIM), jnp.float32)
    root2, other2 = bone_angle_prediction(x2, slab)
    jax.block_until_ready((root2, other2))

    assert root2.shape == (B2, ROOT_ANGLES_NUM)
    assert other2.shape == (B2, OTHER_JOINT_ANGLES_NUM)
    assert jnp.allclose(root2, _reference(x2, params_mlp1), rtol=1e-5, atol=1e-5)
    assert jnp.allclose(other2, _reference(x2, params_mlp2), rtol=1e-5, atol=1e-5)

    print("KERNEL_OK")
</pallas_src>

<mosaic_0001>
module attributes {stable_mosaic.version = 11 : i64} {
  func.func @fused_bone_angle_kernel(%arg0: i32, %arg1: memref<8x64xf32, #tpu.memory_space<vmem>>, %arg2: memref<328x128xf32, #tpu.memory_space<vmem>>, %arg3: memref<8x32xf32, #tpu.memory_space<vmem>>) attributes {dimension_semantics = [#tpu.dimension_semantics<parallel>], iteration_bounds = array<i64: 1>, scalar_prefetch = 0 : i64, scratch_operands = 0 : i64, tpu.core_type = #tpu.core_type<tc>, window_params = [{transform_indices = @transform_0, window_bounds = array<i64: 8, 64>}, {pipeline_mode = #tpu.pipeline_mode<synchronous>, transform_indices = @transform_1, window_bounds = array<i64: 328, 128>}, {transform_indices = @transform_2, window_bounds = array<i64: 8, 32>}]} {
    %c0 = arith.constant 0 : index
    %c0_0 = arith.constant 0 : index
    %0 = vector.load %arg1[%c0, %c0_0] : memref<8x64xf32, #tpu.memory_space<vmem>>, vector<8x64xf32>
    %c0_1 = arith.constant 0 : index
    %c0_2 = arith.constant 0 : index
    %1 = vector.load %arg2[%c0_1, %c0_2] : memref<328x128xf32, #tpu.memory_space<vmem>>, vector<64x128xf32>
    %c64 = arith.constant 64 : index
    %c0_3 = arith.constant 0 : index
    %2 = vector.load %arg2[%c64, %c0_3] : memref<328x128xf32, #tpu.memory_space<vmem>>, vector<128x128xf32>
    %c192 = arith.constant 192 : index
    %c0_4 = arith.constant 0 : index
    %3 = vector.load %arg2[%c192, %c0_4] : memref<328x128xf32, #tpu.memory_space<vmem>>, vector<128x128xf32>
    %c320 = arith.constant 320 : index
    %c0_5 = arith.constant 0 : index
    %4 = vector.load %arg2[%c320, %c0_5] : memref<328x128xf32, #tpu.memory_space<vmem>>, vector<8x128xf32>
    %5 = vector.extract_strided_slice %4 {offsets = [0, 0], sizes = [1, 128], strides = [1, 1]} : vector<8x128xf32> to vector<1x128xf32>
    %6 = vector.extract_strided_slice %4 {offsets = [1, 0], sizes = [1, 128], strides = [1, 1]} : vector<8x128xf32> to vector<1x128xf32>
    %7 = vector.extract_strided_slice %4 {offsets = [2, 0], sizes = [1, 128], strides = [1, 1]} : vector<8x128xf32> to vector<1x128xf32>
    %cst = arith.constant dense<0.000000e+00> : vector<8x128xf32>
    %8 = tpu.matmul %0, %1, %cst {dimension_numbers = #tpu.dot_dimension_numbers<[1], [0], [0], [1], [0, 0, 1, 1], [], []>} : vector<8x64xf32>, vector<64x128xf32>, vector<8x128xf32> -> vector<8x128xf32>
    %9 = vector.broadcast %5 : vector<1x128xf32> to vector<8x128xf32>
    %10 = arith.addf %8, %9 : vector<8x128xf32>
    %cst_6 = arith.constant 0.00999999977 : f32
    %11 = vector.broadcast %cst_6 : f32 to vector<8x128xf32>
    %12 = arith.mulf %11, %10 : vector<8x128xf32>
    %13 = arith.maximumf %10, %12 : vector<8x128xf32>
    %cst_7 = arith.constant dense<0.000000e+00> : vector<8x128xf32>
    %14 = tpu.matmul %13, %2, %cst_7 {dimension_numbers = #tpu.dot_dimension_numbers<[1], [0], [0], [1], [0, 0, 1, 1], [], []>} : vector<8x128xf32>, vector<128x128xf32>, vector<8x128xf32> -> vector<8x128xf32>
    %15 = vector.broadcast %6 : vector<1x128xf32> to vector<8x128xf32>
    %16 = arith.addf %14, %15 : vector<8x128xf32>
    %cst_8 = arith.constant 0.00999999977 : f32
    %17 = vector.broadcast %cst_8 : f32 to vector<8x128xf32>
    %18 = arith.mulf %17, %16 : vector<8x128xf32>
    %19 = arith.maximumf %16, %18 : vector<8x128xf32>
    %cst_9 = arith.constant dense<0.000000e+00> : vector<8x128xf32>
    %20 = tpu.matmul %19, %3, %cst_9 {dimension_numbers = #tpu.dot_dimension_numbers<[1], [0], [0], [1], [0, 0, 1, 1], [], []>} : vector<8x128xf32>, vector<128x128xf32>, vector<8x128xf32> -> vector<8x128xf32>
    %21 = vector.broadcast %7 : vector<1x128xf32> to vector<8x128xf32>
    %22 = arith.addf %20, %21 : vector<8x128xf32>
    %23 = vector.extract_strided_slice %22 {offsets = [0, 0], sizes = [8, 32], strides = [1, 1]} : vector<8x128xf32> to vector<8x32xf32>
    %c0_10 = arith.constant 0 : index
    %c0_11 = arith.constant 0 : index
    %24 = vector.load %arg3[%c0_10, %c0_11] : memref<8x32xf32, #tpu.memory_space<vmem>>, vector<8x32xf32>
    tpu.vector_store %arg3[%c0_10, %c0_11], %23 {strides = array<i32>} : memref<8x32xf32, #tpu.memory_space<vmem>>, vector<8x32xf32>,
    return
  }
  func.func @transform_0(%arg0: i32) -> (i32, i32) {
    %c0_i32 = arith.constant 0 : i32
    %c0_i32_0 = arith.constant 0 : i32
    return %arg0, %c0_i32 : i32, i32
  }
  func.func @transform_1(%arg0: i32) -> (i32, i32) {
    %c0_i32 = arith.constant 0 : i32
    %c0_i32_0 = arith.constant 0 : i32
    %c0_i32_1 = arith.constant 0 : i32
    return %c0_i32, %c0_i32_0 : i32, i32
  }
  func.func @transform_2(%arg0: i32) -> (i32, i32) {
    %c0_i32 = arith.constant 0 : i32
    %c0_i32_0 = arith.constant 0 : i32
    return %arg0, %c0_i32 : i32, i32
  }
}

</mosaic_0001>

<llo_original>
// kernel: bone_angle_prediction.1
$region0: #{bone_angle_prediction.1}
  #allocation0 [shape = 'u32[]', space=smem, size = 0x4, offset = 0x4, fixed_abs, tag = 'smem constant byte address 0x4 - core index']
  #allocation1 [shape = 'u32[72,128]{1,0:T(1,128)}', space=vmem, size = 0x9000, scoped, tag = 'internal scratch']
  %s0 = inlined_call_operand.vmem [shape: f32[8,64], index: 0, kind: input, shape index: {}]
  %s1 = inlined_call_operand.hbm [shape: f32[328,128], index: 1, kind: input, shape index: {}]
  %s2 = inlined_call_operand.vmem [shape: f32[8,32], index: 2, kind: output, shape index: {}]
  %s3 = sld [smem:[#allocation0]]
  $region22: #{bone_angle_prediction.1} parent=0
    _
  %s5 = ssub.s32 1, %s3
  %s6 = scalar_select 0, %s5, %s3
  $region1: #{bone_angle_prediction.1} parent=0
    #allocation2 [shape = 'u8[167936]{0}', space=vmem, size = 0x29000, scoped, tag = 'input window, operand 1, single buffered']
    #allocation3 [shape = 's32[1]{0}', space=sflag, size = 0x4, scoped, tag = 'scoped memory for bone_angle_prediction.1']
    %7 = vsyncpa [#allocation3], 0
    // Predicated region
    $region2: #{bone_angle_prediction.1} parent=1 // pred_check
      _
    $region3: #{bone_angle_prediction.1} parent=1 // pred_check_branch
      %9 = sbr.rel (0) target = $region5
    $region4: #{bone_angle_prediction.1} parent=1 // pred_region
      _
    $region5: #{bone_angle_prediction.1} parent=1 // pred_fallthru
      _
    // Predicated region
    $region6: #{bone_angle_prediction.1} parent=1 // pred_check
      _
    $region7: #{bone_angle_prediction.1} parent=1 // pred_check_branch
      %11 = sbr.rel (0) target = $region9
    $region8: #{bone_angle_prediction.1} parent=1 // pred_region
      %13 = vsyncadd [#allocation3], 0
      %s14 = sshll.u32 %s1, 4
      %s15 = int_to_ptr.hbm [resolvable:$true] %s14
      %s16 = sshll.u32 [#allocation2], 4
      %s17 = int_to_ptr.vmem [resolvable:$true] %s16
      %22 = dma.hbm_to_vmem [thread:$0]  %s15, 5248, %s17, [#allocation3], 128, 128, 8
    $region9: #{bone_angle_prediction.1} parent=1 // pred_fallthru
      _
    // Predicated region
    $region10: #{bone_angle_prediction.1} parent=1 // pred_check
      _
    $region11: #{bone_angle_prediction.1} parent=1 // pred_check_branch
      %24 = sbr.rel (0) target = $region13
    $region12: #{bone_angle_prediction.1} parent=1 // pred_region
      %26 = dma.done [#allocation3], 5248
    $region13: #{bone_angle_prediction.1} parent=1 // pred_fallthru
      _
    %v27 = vld [vmem:[%s0] sm:$0xff]
    %v28 = vld [vmem:[#allocation2] sm:$0xff]
    %v29 = vld [vmem:[#allocation2 + $0x8] sm:$0xff]
    %v30 = vld [vmem:[#allocation2 + $0x10] sm:$0xff]
    %v31 = vld [vmem:[#allocation2 + $0x18] sm:$0xff]
    %v32 = vld [vmem:[#allocation2 + $0x20] sm:$0xff]
    %v33 = vld [vmem:[#allocation2 + $0x28] sm:$0xff]
    %v34 = vld [vmem:[#allocation2 + $0x30] sm:$0xff]
    %v35 = vld [vmem:[#allocation2 + $0x38] sm:$0xff]
    %v36 = vld [vmem:[#allocation2 + $0x40] sm:$0xff]
    %v37 = vld [vmem:[#allocation2 + $0x48] sm:$0xff]
    %v38 = vld [vmem:[#allocation2 + $0x50] sm:$0xff]
    %v39 = vld [vmem:[#allocation2 + $0x58] sm:$0xff]
    %v40 = vld [vmem:[#allocation2 + $0x60] sm:$0xff]
    %v41 = vld [vmem:[#allocation2 + $0x68] sm:$0xff]
    %v42 = vld [vmem:[#allocation2 + $0x70] sm:$0xff]
    %v43 = vld [vmem:[#allocation2 + $0x78] sm:$0xff]
    %v44 = vld [vmem:[#allocation2 + $0x80] sm:$0xff]
    %v45 = vld [vmem:[#allocation2 + $0x88] sm:$0xff]
    %v46 = vld [vmem:[#allocation2 + $0x90] sm:$0xff]
    %v47 = vld [vmem:[#allocation2 + $0x98] sm:$0xff]
    %v48 = vld [vmem:[#allocation2 + $0xa0] sm:$0xff]
    %v49 = vld [vmem:[#allocation2 + $0xa8] sm:$0xff]
    %v50 = vld [vmem:[#allocation2 + $0xb0] sm:$0xff]
    %v51 = vld [vmem:[#allocation2 + $0xb8] sm:$0xff]
    %v52 = vld [vmem:[#allocation2 + $0xc0] sm:$0xff]
    %v53 = vld [vmem:[#allocation2 + $0xc8] sm:$0xff]
    %v54 = vld [vmem:[#allocation2 + $0xd0] sm:$0xff]
    %v55 = vld [vmem:[#allocation2 + $0xd8] sm:$0xff]
    %v56 = vld [vmem:[#allocation2 + $0xe0] sm:$0xff]
    %v57 = vld [vmem:[#allocation2 + $0xe8] sm:$0xff]
    %v58 = vld [vmem:[#allocation2 + $0xf0] sm:$0xff]
    %v59 = vld [vmem:[#allocation2 + $0xf8] sm:$0xff]
    %v60 = vld [vmem:[#allocation2 + $0x100] sm:$0xff]
    %v61 = vld [vmem:[#allocation2 + $0x108] sm:$0xff]
    %v62 = vld [vmem:[#allocation2 + $0x110] sm:$0xff]
    %v63 = vld [vmem:[#allocation2 + $0x118] sm:$0xff]
    %v64 = vld [vmem:[#allocation2 + $0x120] sm:$0xff]
    %v65 = vld [vmem:[#allocation2 + $0x128] sm:$0xff]
    %v66 = vld [vmem:[#allocation2 + $0x130] sm:$0xff]
    %v67 = vld [vmem:[#allocation2 + $0x138] sm:$0xff]
    %v68 = vld [vmem:[#allocation2 + $0x140] sm:$0xff]
    %v69 = vperm.slane %v68, 0
    %vm70 = vcmask 523264
    %v72 = vsel %vm70, %v27, 0
    %74 = vmatpush.msra.mxu0 0.0
    %75 = vmatpush.msra.mxu0 0.0
    %76 = vmatpush.msra.mxu0 0.0
    %77 = vmatpush.msra.mxu0 0.0
    %78 = vmatpush.msra.mxu0 0.0
    %79 = vmatpush.msra.mxu0 0.0
    %80 = vmatpush.msra.mxu0 0.0
    %81 = vmatpush.msra.mxu0 0.0
    %82 = vmatpush.msra.mxu0 %v35
    %83 = vmatpush.msra.mxu0 %v34
    %84 = vmatpush.msra.mxu0 %v33
    %85 = vmatpush.msra.mxu0 %v32
    %86 = vmatpush.msra.mxu0 %v31
    %87 = vmatpush.msra.mxu0 %v30
    %88 = vmatpush.msra.mxu0 %v29
    %89 = vmatpush.msra.mxu0 %v28
    %90 = vmatmul.f32.gmra.mxu0 %v72
    %v91 = vpop.f32.mrf.mxu0
    %v92 = vadd.f32 %v69, %v91
    %93 = vdwg.mxu0
    %v94 = vmul.f32 %v92, 0.01
    %v95 = vmax.f32 %v92, %v94
    %v96 = vperm.slane %v68, 1
    %97 = vmatpush.msra.mxu0 %v51
    %98 = vmatpush.msra.mxu0 %v50
    %99 = vmatpush.msra.mxu0 %v49
    %100 = vmatpush.msra.mxu0 %v48
    %101 = vmatpush.msra.mxu0 %v47
    %102 = vmatpush.msra.mxu0 %v46
    %103 = vmatpush.msra.mxu0 %v45
    %104 = vmatpush.msra.mxu0 %v44
    %105 = vmatpush.msra.mxu0 %v43
    %106 = vmatpush.msra.mxu0 %v42
    %107 = vmatpush.msra.mxu0 %v41
    %108 = vmatpush.msra.mxu0 %v40
    %109 = vmatpush.msra.mxu0 %v39
    %110 = vmatpush.msra.mxu0 %v38
    %111 = vmatpush.msra.mxu0 %v37
    %112 = vmatpush.msra.mxu0 %v36
    %113 = vmatmul.f32.gmra.mxu0 %v95
    %v114 = vpop.f32.mrf.mxu0
    %v115 = vadd.f32 %v96, %v114
    %116 = vdwg.mxu0
    %v117 = vmul.f32 %v115, 0.01
    %v118 = vmax.f32 %v115, %v117
    %v119 = vperm.slane %v68, 2
    %120 = vmatpush.msra.mxu0 %v67
    %121 = vmatpush.msra.mxu0 %v66
    %122 = vmatpush.msra.mxu0 %v65
    %123 = vmatpush.msra.mxu0 %v64
    %124 = vmatpush.msra.mxu0 %v63
    %125 = vmatpush.msra.mxu0 %v62
    %126 = vmatpush.msra.mxu0 %v61
    %127 = vmatpush.msra.mxu0 %v60
    %128 = vmatpush.msra.mxu0 %v59
    %129 = vmatpush.msra.mxu0 %v58
    %130 = vmatpush.msra.mxu0 %v57
    %131 = vmatpush.msra.mxu0 %v56
    %132 = vmatpush.msra.mxu0 %v55
    %133 = vmatpush.msra.mxu0 %v54
    %134 = vmatpush.msra.mxu0 %v53
    %135 = vmatpush.msra.mxu0 %v52
    %136 = vmatmul.f32.gmra.mxu0 %v118
    %v137 = vpop.f32.mrf.mxu0
    %v138 = vadd.f32 %v119, %v137
    %139 = vdwg.mxu0
    %vm140 = vcmask 261120
    %141 = vst.msk [vmem:[%s2] sm:$0xff] %vm140, %v138
    // Predicated region
    $region14: #{bone_angle_prediction.1} parent=1 // pred_check
      _
    $region15: #{bone_angle_prediction.1} parent=1 // pred_check_branch
      %143 = sbr.rel (0) target = $region17
    $region16: #{bone_angle_prediction.1} parent=1 // pred_region
      _
    $region17: #{bone_angle_prediction.1} parent=1 // pred_fallthru
      _
    // Predicated region
    $region18: #{bone_angle_prediction.1} parent=1 // pred_check
      _
    $region19: #{bone_angle_prediction.1} parent=1 // pred_check_branch
      %145 = sbr.rel (0) target = $region21
    $region20: #{bone_angle_prediction.1} parent=1 // pred_region
      _
    $region21: #{bone_angle_prediction.1} parent=1 // pred_fallthru
      _
    %146 = vsyncpa [#allocation3], 1

</llo_original>
